<compile_context>
chip_gen: v7x
topology: tpu7x:2x2x1
jax: 0.10.0
libtpu: 0.0.40
codegen_flags: <defaults>
</compile_context>

<pallas_src>
import functools

import jax
import jax.numpy as jnp
from jax import lax
from jax.experimental import pallas as pl
from jax.experimental.pallas import tpu as pltpu

_BN_EPS = 1e-5


# ---------------------------------------------------------------------------
# Small runtime probe: pin down pltpu.roll's shift convention once, so the
# 3x3 tap shifts can never be silently mirrored by a convention difference.
# ---------------------------------------------------------------------------
@functools.lru_cache(maxsize=None)
def _roll_matches_jnp():
    """True iff pltpu.roll(x, +1, axis=-1) moves elements toward higher indices
    (i.e. behaves like jnp.roll)."""
    def probe(x_ref, o_ref):
        o_ref[...] = pltpu.roll(x_ref[...], 1, axis=1)

    x = jnp.arange(8 * 128, dtype=jnp.float32).reshape(8, 128)
    y = pl.pallas_call(
        probe, out_shape=jax.ShapeDtypeStruct((8, 128), jnp.float32))(x)
    return bool(y[0, 1] == x[0, 0])


@functools.lru_cache(maxsize=None)
def _vmem_budget_bytes():
    # Generation-aware in-flight tile budget (double buffering is counted by the
    # callers), clamped so it stays under every generation's default scoped-VMEM
    # limit (v5e 16 MiB / v6e 32 MiB / v7x 32 MiB) without vmem_limit_bytes.
    try:
        cap = int(pltpu.get_tpu_info().vmem_capacity_bytes)
    except Exception:
        cap = 64 * 1024 * 1024
    return int(max(2 * 1024 * 1024, min(cap // 8, 10 * 1024 * 1024)))


def _pick_tile(m, granule, bytes_per_col, budget):
    """Largest multiple of `granule` dividing m that fits the VMEM budget and
    keeps >= 2 grid steps (pipelining, and both TensorCores on v7x) if possible."""
    divs = [d for d in range(granule, m + 1, granule) if m % d == 0]
    if not divs:
        return m
    fit = [d for d in divs if d * bytes_per_col <= budget] or [divs[0]]
    multi = [d for d in fit if m // d >= 2]
    return max(multi) if multi else max(fit)


# ---------------------------------------------------------------------------
# In-kernel helpers
# ---------------------------------------------------------------------------
def _silu(v):
    # v * sigmoid(v); the divide runs on the EUP via an approximate reciprocal.
    return v * pl.reciprocal(1.0 + jnp.exp(-v), approx=True)


def _tap_matmul(x_bf16, w_ref, shifts):
    """sum_t W[t] @ shift(x, t), accumulated in f32.

    x_bf16 : (ci, tm) bf16 activation tile (padded-flat spatial on lanes).
    w_ref  : (n_taps, co, ci) bf16 weight ref.
    shifts : static lane-roll amounts (already adjusted to the roll convention).
    The rolls are done on an f32 copy (native 32-bit lane rotate on the XLU);
    operands are cast back to bf16 for the MXU.
    """
    _, tm = x_bf16.shape
    co = w_ref.shape[1]
    xf = x_bf16.astype(jnp.float32)
    acc = jnp.zeros((co, tm), jnp.float32)
    for t, sh in enumerate(shifts):
        if sh == 0:
            xt = x_bf16
        else:
            xt = pltpu.roll(xf, sh, axis=1).astype(jnp.bfloat16)
        acc = acc + jnp.dot(w_ref[t], xt, preferred_element_type=jnp.float32)
    return acc


# ---------------------------------------------------------------------------
# Pallas kernel bodies
# ---------------------------------------------------------------------------
def _cv1_split_kernel(x_ref, w_ref, b_ref, m_ref, a_ref, b2_ref):
    # silu(W @ x + b), ring re-zeroed, split into the two CSP halves (fused split).
    acc = jnp.dot(w_ref[...], x_ref[...], preferred_element_type=jnp.float32)
    y = _silu(acc + b_ref[...]) * m_ref[...]
    y = y.astype(a_ref.dtype)
    c = a_ref.shape[0]
    a_ref[...] = y[:c]
    b2_ref[...] = y[c:]


def _bottleneck_kernel(shifts, add, x_ref, w1_ref, b1_ref, w2_ref, b2_ref,
                       m_ref, o_ref):
    # Fused Bottleneck: 3x3 conv+BN+SiLU -> 3x3 conv+BN+SiLU [+ x].
    # The intermediate activation t never leaves VMEM.
    mask = m_ref[...]
    x = x_ref[...]
    t = (_silu(_tap_matmul(x, w1_ref, shifts) + b1_ref[...]) * mask
         ).astype(x.dtype)
    y = _silu(_tap_matmul(t, w2_ref, shifts) + b2_ref[...]) * mask
    if add:
        y = y + x.astype(jnp.float32)
    o_ref[...] = y.astype(o_ref.dtype)


def _cv2_concat_kernel(a_ref, b_ref, wa_ref, wb_ref, bias_ref, m_ref, o_ref):
    # silu(Wa @ a + Wb @ b + bias): the CSP channel concat is fused into the matmul.
    acc = jnp.dot(wa_ref[...], a_ref[...], preferred_element_type=jnp.float32)
    acc = acc + jnp.dot(wb_ref[...], b_ref[...],
                        preferred_element_type=jnp.float32)
    y = _silu(acc + bias_ref[...]) * m_ref[...]
    o_ref[...] = y.astype(o_ref.dtype)


# ---------------------------------------------------------------------------
# pallas_call wrappers
# ---------------------------------------------------------------------------
def _cv1_split(x_cm, w, bias, mask, c_split):
    co, ci = w.shape
    m = x_cm.shape[1]
    bpc = 2 * (ci * 2 + 4) + 2 * (co * 2) + co * 4
    tm = _pick_tile(m, 128, bpc, _vmem_budget_bytes())
    return pl.pallas_call(
        _cv1_split_kernel,
        out_shape=(jax.ShapeDtypeStruct((c_split, m), jnp.bfloat16),
                   jax.ShapeDtypeStruct((co - c_split, m), jnp.bfloat16)),
        grid=(m // tm,),
        in_specs=[pl.BlockSpec((ci, tm), lambda i: (0, i)),
                  pl.BlockSpec((co, ci), lambda i: (0, 0)),
                  pl.BlockSpec((co, 1), lambda i: (0, 0)),
                  pl.BlockSpec((1, tm), lambda i: (0, i))],
        out_specs=(pl.BlockSpec((c_split, tm), lambda i: (0, i)),
                   pl.BlockSpec((co - c_split, tm), lambda i: (0, i))),
        compiler_params=pltpu.CompilerParams(
            dimension_semantics=("parallel",)),
        cost_estimate=pl.CostEstimate(
            flops=2 * co * ci * m,
            transcendentals=co * m,
            bytes_accessed=m * ci * 2 + co * ci * 2 + co * 4 + m * 4 + m * co * 2),
    )(x_cm, w, bias, mask)


def _bottleneck(x_cm, w1, b1, w2, b2, mask, offsets, granule, add, like_jnp):
    ci, m = x_cm.shape
    c_mid = w1.shape[1]
    co = w2.shape[1]
    bpc = 2 * (ci * 2 + 4) + 2 * (co * 2) + (ci + c_mid + co) * 4 + c_mid * 2
    tm = _pick_tile(m, granule, bpc, _vmem_budget_bytes())
    shifts = tuple(((-s) % tm) if like_jnp else (s % tm) for s in offsets)
    kernel = functools.partial(_bottleneck_kernel, shifts, bool(add))
    return pl.pallas_call(
        kernel,
        out_shape=jax.ShapeDtypeStruct((co, m), jnp.bfloat16),
        grid=(m // tm,),
        in_specs=[pl.BlockSpec((ci, tm), lambda i: (0, i)),
                  pl.BlockSpec(w1.shape, lambda i: (0, 0, 0)),
                  pl.BlockSpec((c_mid, 1), lambda i: (0, 0)),
                  pl.BlockSpec(w2.shape, lambda i: (0, 0, 0)),
                  pl.BlockSpec((co, 1), lambda i: (0, 0)),
                  pl.BlockSpec((1, tm), lambda i: (0, i))],
        out_specs=pl.BlockSpec((co, tm), lambda i: (0, i)),
        compiler_params=pltpu.CompilerParams(
            dimension_semantics=("parallel",)),
        cost_estimate=pl.CostEstimate(
            flops=2 * 9 * (ci * c_mid + c_mid * co) * m,
            transcendentals=(c_mid + co) * m,
            bytes_accessed=(m * ci * 2 + 9 * (ci * c_mid + c_mid * co) * 2
                            + (c_mid + co) * 4 + m * 4 + m * co * 2)),
    )(x_cm, w1, b1, w2, b2, mask)


def _cv2_concat(a_cm, b_cm, wa, wb, bias, mask):
    ca, m = a_cm.shape
    cb = b_cm.shape[0]
    co = wa.shape[0]
    bpc = 2 * ((ca + cb) * 2 + 4) + 2 * (co * 4) + co * 4
    tm = _pick_tile(m, 128, bpc, _vmem_budget_bytes())
    return pl.pallas_call(
        _cv2_concat_kernel,
        out_shape=jax.ShapeDtypeStruct((co, m), jnp.float32),
        grid=(m // tm,),
        in_specs=[pl.BlockSpec((ca, tm), lambda i: (0, i)),
                  pl.BlockSpec((cb, tm), lambda i: (0, i)),
                  pl.BlockSpec((co, ca), lambda i: (0, 0)),
                  pl.BlockSpec((co, cb), lambda i: (0, 0)),
                  pl.BlockSpec((co, 1), lambda i: (0, 0)),
                  pl.BlockSpec((1, tm), lambda i: (0, i))],
        out_specs=pl.BlockSpec((co, tm), lambda i: (0, i)),
        compiler_params=pltpu.CompilerParams(
            dimension_semantics=("parallel",)),
        cost_estimate=pl.CostEstimate(
            flops=2 * co * (ca + cb) * m,
            transcendentals=co * m,
            bytes_accessed=(m * (ca + cb) * 2 + co * (ca + cb) * 2 + co * 4
                            + m * 4 + m * co * 4)),
    )(a_cm, b_cm, wa, wb, bias, mask)


# ---------------------------------------------------------------------------
# BN folding, channel-major weight packing, layout conversion, interior mask
# ---------------------------------------------------------------------------
def _fold_bn(p):
    scale = p["gamma"] / jnp.sqrt(p["var"] + _BN_EPS)         # (cout,)
    return p["w"] * scale, p["beta"] - p["mean"] * scale       # HWIO, (cout,)


def _pack_1x1(p):
    w_f, b_f = _fold_bn(p)                                     # (1,1,ci,co)
    ci, co = w_f.shape[2], w_f.shape[3]
    w_cm = jnp.transpose(w_f.reshape(ci, co), (1, 0)).astype(jnp.bfloat16)
    return w_cm, b_f.reshape(co, 1).astype(jnp.float32)


def _pack_3x3(p):
    w_f, b_f = _fold_bn(p)                                     # (3,3,ci,co)
    ci, co = w_f.shape[2], w_f.shape[3]
    w_cm = jnp.transpose(w_f.reshape(9, ci, co), (0, 2, 1)).astype(jnp.bfloat16)
    return w_cm, b_f.reshape(co, 1).astype(jnp.float32)


def _round_up(v, d):
    return -(-v // d) * d


def _to_channel_major(x_nchw, p_pad):
    n, c, h, w = x_nchw.shape
    xp = jnp.pad(x_nchw, ((0, 0), (0, 0), (1, 1), (1, 1)))     # zero halo
    xp = xp.reshape(n, c, (h + 2) * (w + 2))
    xp = jnp.pad(xp, ((0, 0), (0, 0), (0, p_pad - (h + 2) * (w + 2))))
    return jnp.transpose(xp, (1, 0, 2)).reshape(c, n * p_pad)


def _from_channel_major(y_cm, n, h, w, p_pad):
    c = y_cm.shape[0]
    y = y_cm.reshape(c, n, p_pad)[:, :, :(h + 2) * (w + 2)]
    y = y.reshape(c, n, h + 2, w + 2)[:, :, 1:h + 1, 1:w + 1]
    return jnp.transpose(y, (1, 0, 2, 3))


def _interior_mask(n, h, w, p_pad):
    m2d = jnp.zeros((h + 2, w + 2), jnp.float32).at[1:h + 1, 1:w + 1].set(1.0)
    m1d = jnp.pad(m2d.reshape(-1), (0, p_pad - (h + 2) * (w + 2)))
    return jnp.tile(m1d, n).reshape(1, n * p_pad)


# ---------------------------------------------------------------------------
# C2 forward (Pallas) and pure-JAX f32 reference
# ---------------------------------------------------------------------------
def c2_forward_pallas(x_nchw, params):
    n, _, h, w = x_nchw.shape
    p_plane = (h + 2) * (w + 2)
    p_pad = _round_up(p_plane, 128)
    c = params["c"]

    like_jnp = _roll_matches_jnp()
    mask = _interior_mask(n, h, w, p_pad)
    x_cm = _to_channel_major(x_nchw, p_pad).astype(jnp.bfloat16)

    # cv1 (1x1) with fused channel split into the two CSP halves.
    w1, b1 = _pack_1x1(params["cv1"])
    a_cm, b_cm = _cv1_split(x_cm, w1, b1, mask, c)

    # Bottleneck chain: each is one fused 3x3 -> 3x3 (+ residual) kernel.
    # Source offset of tap (dy, dx) in the padded-flat plane.
    offsets = tuple((dy - 1) * (w + 2) + (dx - 1)
                    for dy in range(3) for dx in range(3))
    for bp in params["m"]:
        wa, ba = _pack_3x3(bp["cv1"])
        wb, bb = _pack_3x3(bp["cv2"])
        a_cm = _bottleneck(a_cm, wa, ba, wb, bb, mask, offsets,
                           granule=p_pad, add=bp["add"], like_jnp=like_jnp)

    # cv2 (1x1) with the channel concat cat(m(a), b) fused into the matmul.
    w2, b2 = _pack_1x1(params["cv2"])
    out_cm = _cv2_concat(a_cm, b_cm, w2[:, :c], w2[:, c:], b2, mask)
    return _from_channel_major(out_cm, n, h, w, p_pad)


def _conv_bn_silu_ref(x_nhwc, p):
    y = lax.conv_general_dilated(
        x_nhwc, p["w"], window_strides=(1, 1), padding="SAME",
        dimension_numbers=("NHWC", "HWIO", "NHWC"),
        precision=lax.Precision.HIGHEST)
    scale = p["gamma"] / jnp.sqrt(p["var"] + _BN_EPS)
    y = (y - p["mean"]) * scale + p["beta"]
    return y * jax.nn.sigmoid(y)


def c2_forward_ref(x_nchw, params):
    x = jnp.transpose(x_nchw, (0, 2, 3, 1))
    y = _conv_bn_silu_ref(x, params["cv1"])
    c = params["c"]
    a, b = y[..., :c], y[..., c:]
    for bp in params["m"]:
        t = _conv_bn_silu_ref(a, bp["cv1"])
        t = _conv_bn_silu_ref(t, bp["cv2"])
        a = a + t if bp["add"] else t
    z = jnp.concatenate([a, b], axis=-1)
    out = _conv_bn_silu_ref(z, params["cv2"])
    return jnp.transpose(out, (0, 3, 1, 2))


# ---------------------------------------------------------------------------
# Parameter construction (Conv2d weight + eval-mode BatchNorm stats)
# ---------------------------------------------------------------------------
def _make_conv_params(key, cin, cout, k):
    kw, kg, kb, km, kv = jax.random.split(key, 5)
    fan_in = cin * k * k
    return {
        "w": jax.random.normal(kw, (k, k, cin, cout), jnp.float32) / jnp.sqrt(fan_in),
        "gamma": 1.0 + 0.1 * jax.random.normal(kg, (cout,), jnp.float32),
        "beta": 0.1 * jax.random.normal(kb, (cout,), jnp.float32),
        "mean": 0.1 * jax.random.normal(km, (cout,), jnp.float32),
        "var": 0.9 + 0.1 * jnp.abs(jax.random.normal(kv, (cout,), jnp.float32)),
    }


def make_c2_params(key, c1, c2, n=1, shortcut=True, e=0.5):
    c = int(c2 * e)
    keys = jax.random.split(key, 2 + 2 * n)
    params = {
        "c": c,
        "cv1": _make_conv_params(keys[0], c1, 2 * c, 1),
        "cv2": _make_conv_params(keys[1], 2 * c, c2, 1),
        "m": [],
    }
    for i in range(n):
        params["m"].append({
            "cv1": _make_conv_params(keys[2 + 2 * i], c, c, 3),
            "cv2": _make_conv_params(keys[3 + 2 * i], c, c, 3),
            "add": bool(shortcut),  # Bottleneck uses e=1.0 so cin == cout
        })
    return params


if __name__ == "__main__":
    key = jax.random.PRNGKey(0)
    kx, kp = jax.random.split(key)

    B, C1, C2_OUT, H, W, N_BLOCKS = 2, 32, 32, 16, 16, 1
    x = jax.random.normal(kx, (B, C1, H, W), dtype=jnp.float32)
    params = make_c2_params(kp, C1, C2_OUT, n=N_BLOCKS, shortcut=True, e=0.5)

    y = jax.block_until_ready(c2_forward_pallas(x, params))
    y_ref = jax.block_until_ready(c2_forward_ref(x, params))

    assert y.shape == (B, C2_OUT, H, W) and y.dtype == x.dtype
    max_err = float(jnp.max(jnp.abs(y - y_ref)))
    # bf16 MXU operands (f32 accumulation / f32 epilogue) vs the pure-f32
    # reference: tolerance loosened accordingly.
    assert jnp.allclose(y, y_ref, atol=5e-2, rtol=5e-2), f"max_err={max_err}"

    print("KERNEL_OK")
</pallas_src>

<mosaic_0001>
module attributes {stable_mosaic.version = 11 : i64} {
  func.func @probe(%arg0: memref<8x128xf32, #tpu.memory_space<vmem>>, %arg1: memref<8x128xf32, #tpu.memory_space<vmem>>) attributes {dimension_semantics = [], scalar_prefetch = 0 : i64, scratch_operands = 0 : i64, tpu.core_type = #tpu.core_type<tc>} {
    %c0 = arith.constant 0 : index
    %c0_0 = arith.constant 0 : index
    %0 = vector.load %arg0[%c0, %c0_0] : memref<8x128xf32, #tpu.memory_space<vmem>>, vector<8x128xf32>
    %c1_i32 = arith.constant 1 : i32
    %1 = tpu.dynamic_rotate %0 by %c1_i32 dim 1 : vector<8x128xf32>, i32 -> vector<8x128xf32>
    %c0_1 = arith.constant 0 : index
    %c0_2 = arith.constant 0 : index
    %2 = vector.load %arg1[%c0_1, %c0_2] : memref<8x128xf32, #tpu.memory_space<vmem>>, vector<8x128xf32>
    tpu.vector_store %arg1[%c0_1, %c0_2], %1 {strides = array<i32>} : memref<8x128xf32, #tpu.memory_space<vmem>>, vector<8x128xf32>,
    return
  }
}

</mosaic_0001>

<llo_original>
// kernel: tpu_custom_call.1
$region0: #{tpu_custom_call.1}
  #allocation0 [shape = 'u32[]', space=smem, size = 0x4, offset = 0x4, fixed_abs, tag = 'smem constant byte address 0x4 - core index']
  #allocation1 [shape = 'u32[144,128]{1,0:T(1,128)}', space=vmem, size = 0x12000, scoped, tag = 'internal scratch']
  %s0 = inlined_call_operand.hbm [shape: f32[8,128], index: 0, kind: input, shape index: {}]
  %s1 = inlined_call_operand.hbm [shape: f32[8,128], index: 1, kind: output, shape index: {}]
  %s2 = sld [smem:[#allocation0]]
  $region18: #{tpu_custom_call.1} parent=0
    _
  %s4 = ssub.s32 1, %s2
  %s5 = scalar_select 0, %s4, %s2
  $region1: #{tpu_custom_call.1} parent=0
    #allocation2 [shape = 'u8[4096]{0}', space=vmem, size = 0x1000, scoped, tag = 'input window, operand 0, single buffered']
    #allocation3 [shape = 's32[1]{0}', space=sflag, size = 0x4, scoped, tag = 'scoped memory for tpu_custom_call.1']
    #allocation4 [shape = 's32[1]{0}', space=sflag, size = 0x4, scoped, tag = 'scoped memory for tpu_custom_call.1']
    #allocation5 [shape = 'u8[4096]{0}', space=vmem, size = 0x1000, scoped, tag = 'output window, operand 0, single buffered']
    %6 = vsyncpa [#allocation3], 0
    %7 = vsyncpa [#allocation4], 0
    // Predicated region
    $region2: #{tpu_custom_call.1} parent=1 // pred_check
      _
    $region3: #{tpu_custom_call.1} parent=1 // pred_check_branch
      %9 = sbr.rel (0) target = $region5
    $region4: #{tpu_custom_call.1} parent=1 // pred_region
      %s11 = ssub.s32 128, 128
      %12 = vsyncadd [#allocation3], %s11
      %s14 = sshll.u32 [#allocation2], 4
      %s15 = int_to_ptr.vmem [resolvable:$true] %s14
      %17 = dma.hbm_to_vmem [thread:$0]  %s0, 128, %s15, [#allocation3]
    $region5: #{tpu_custom_call.1} parent=1 // pred_fallthru
      _
    // Predicated region
    $region6: #{tpu_custom_call.1} parent=1 // pred_check
      _
    $region7: #{tpu_custom_call.1} parent=1 // pred_check_branch
      %19 = sbr.rel (0) target = $region9
    $region8: #{tpu_custom_call.1} parent=1 // pred_region
      %20 = dma.done [#allocation3], 128
    $region9: #{tpu_custom_call.1} parent=1 // pred_fallthru
      _
    %v21 = vld [vmem:[#allocation2] sm:$0xff]
    %22 = vrot.lane.b32.xlu0 %v21, 1
    %v23 = vpop.permute.xlu0 %22
    %24 = vst [vmem:[#allocation5] sm:$0xff] %v23
    // Predicated region
    $region10: #{tpu_custom_call.1} parent=1 // pred_check
      _
    $region11: #{tpu_custom_call.1} parent=1 // pred_check_branch
      %26 = sbr.rel (0) target = $region13
    $region12: #{tpu_custom_call.1} parent=1 // pred_region
      %s28 = ssub.s32 128, 128
      %29 = vsyncadd [#allocation4], %s28
      %s31 = sshll.u32 [#allocation5], 4
      %s32 = int_to_ptr.vmem [resolvable:$true] %s31
      %34 = dma.vmem_to_hbm [thread:$0]  %s32, 128, %s1, [#allocation4]
    $region13: #{tpu_custom_call.1} parent=1 // pred_fallthru
      _
    // Predicated region
    $region14: #{tpu_custom_call.1} parent=1 // pred_check
      _
    $region15: #{tpu_custom_call.1} parent=1 // pred_check_branch
      %36 = sbr.rel (0) target = $region17
    $region16: #{tpu_custom_call.1} parent=1 // pred_region
      %37 = dma.done [#allocation4], 128
    $region17: #{tpu_custom_call.1} parent=1 // pred_fallthru
      _
    %38 = vsyncpa [#allocation3], 1
    %39 = vsyncpa [#allocation4], 1

</llo_original>
